<compile_context>
chip_gen: v7x
topology: tpu7x:2x2x1
jax: 0.10.0
libtpu: 0.0.40
codegen_flags: <defaults>
</compile_context>

<pallas_src>
import functools

import jax
import jax.numpy as jnp
from jax.experimental import pallas as pl
from jax.experimental.pallas import tpu as pltpu

_EPS = 1e-8                       # clamp floor applied to softmax probabilities
_NEG_LOG_1E4 = 9.210340371976184  # -log(1e-4), from clamp(one_hot, min=1e-4)


def _round_up(x, m):
    return ((x + m - 1) // m) * m


def _sce_kernel(pred_ref, lab_ref, out_ref, *, a, b, n_valid, mask_last):
    i = pl.program_id(0)

    x = pred_ref[...].astype(jnp.float32)                # (bn, C) f32
    bn, C = x.shape
    labels = lab_ref[...]                                 # (bn, 1) int32

    # Gather the logit at the label via an iota compare (no real gather on TPU).
    class_iota = jax.lax.broadcasted_iota(jnp.int32, (bn, C), 1)
    x_label = jnp.sum(jnp.where(class_iota == labels, x, 0.0),
                      axis=1, keepdims=True)              # (bn, 1)

    # Stable log-sum-exp, shared by CE and the softmax terms.
    m = jnp.max(x, axis=1, keepdims=True)                 # (bn, 1)
    ex = jnp.exp(x - m)                                   # (bn, C)  (EUP)
    s = jnp.sum(ex, axis=1, keepdims=True)                # (bn, 1)
    lse = m + jnp.log(s)                                  # (bn, 1)

    # Cross-entropy per row: -log_softmax(x)[label].
    ce = lse - x_label                                    # (bn, 1)

    # Reverse CE:  rce = -log(1e-4) * (sum_c clamp(p_c) - clamp(p_label)).
    # The max-clamp at 1.0 never binds (softmax <= 1).  Exact division on a
    # (bn,1) column keeps us inside the 1e-5 tolerance vs the reference.
    sum_p = jnp.sum(jnp.maximum(ex, _EPS * s), axis=1, keepdims=True) / s
    p_label = jnp.maximum(jnp.exp(-ce), _EPS)             # softmax at the label
    rce = _NEG_LOG_1E4 * (sum_p - p_label)                # (bn, 1)

    vals = a * ce + b * rce                               # (bn, 1)

    if not mask_last:
        # block_n divides N exactly: no masking anywhere.
        out_ref[...] = jnp.sum(vals, axis=0, keepdims=True)
    else:
        last = pl.num_programs(0) - 1

        @pl.when(i != last)
        def _():
            out_ref[...] = jnp.sum(vals, axis=0, keepdims=True)

        @pl.when(i == last)
        def _():
            # Only the final (ragged) block pays for the validity mask.
            row = jax.lax.broadcasted_iota(jnp.int32, (bn, 1), 0)
            valid = (i * bn + row) < n_valid
            out_ref[...] = jnp.sum(jnp.where(valid, vals, 0.0),
                                   axis=0, keepdims=True)


def sce_loss(pred, labels, *, a=1.0, b=1.0, block_n=None):
    """SCELoss forward: a * CE(pred, labels) + b * mean(RCE). Returns a scalar."""
    N, C = pred.shape
    c_pad = _round_up(C, 128)
    itemsize = jnp.dtype(pred.dtype).itemsize
    sub = 8 if itemsize >= 4 else (16 if itemsize == 2 else 32)

    # Conservative per-row VMEM bytes (lane padding to 128 included):
    #   pred block x2 buffers (input dtype)   : 2 * itemsize * Cpad
    #   ~6 live f32 (bn, Cpad) temporaries    : 6 * 4 * Cpad
    #   label (bn,1) block x2 buffers (lane-padded tiles)      : 2 * 4 * 128
    #   ~8 live f32 (bn,1) per-row column temporaries          : 8 * 4 * 128
    per_row_bytes = 2 * itemsize * c_pad + 6 * 4 * c_pad + 2 * 4 * 128 + 8 * 4 * 128

    if block_n is None:
        budget = 20 * (1 << 20)                # working-set target, fits all gens
        block_n = min(budget // per_row_bytes, 4096)
        # Keep >= ~8 grid steps when N is large enough (DMA/compute pipelining,
        # and both TensorCores on v7x via the "parallel" grid axis).
        block_n = min(block_n, _round_up(pl.cdiv(N, 8), sub))
    block_n = max(sub, (block_n // sub) * sub)
    block_n = min(block_n, _round_up(N, sub))

    n_blocks = pl.cdiv(N, block_n)
    mask_last = (N % block_n) != 0
    labels2d = labels.astype(jnp.int32).reshape(N, 1)

    # Explicit scoped-VMEM limit derived from the accounting above (with
    # headroom); >= 32 MiB floor is safe on every generation, 40 MiB cap stays
    # well under v7x's 64 MiB physical VMEM per TensorCore.
    vmem_limit = int(min(max(per_row_bytes * block_n * 5 // 4 + (1 << 20),
                             32 * (1 << 20)),
                         40 * (1 << 20)))

    kernel = functools.partial(_sce_kernel, a=float(a), b=float(b),
                               n_valid=N, mask_last=mask_last)

    partials = pl.pallas_call(
        kernel,
        out_shape=jax.ShapeDtypeStruct((n_blocks, 1), jnp.float32),
        grid_spec=pltpu.PrefetchScalarGridSpec(
            num_scalar_prefetch=0,
            grid=(n_blocks,),
            in_specs=[
                pl.BlockSpec((block_n, C), lambda i: (i, 0)),
                pl.BlockSpec((block_n, 1), lambda i: (i, 0)),
            ],
            out_specs=pl.BlockSpec((1, 1), lambda i: (i, 0)),
        ),
        compiler_params=pltpu.CompilerParams(
            dimension_semantics=("parallel",),
            vmem_limit_bytes=vmem_limit,
        ),
    )(pred, labels2d)

    # Tiny final reduction over n_blocks partial sums (not N rows).
    return jnp.sum(partials) / N


def _reference(pred, labels, *, num_classes, a=1.0, b=1.0):
    # Plain-JAX mirror of the PyTorch SCELoss module.
    logp = jax.nn.log_softmax(pred.astype(jnp.float32), axis=1)
    ce = -jnp.mean(jnp.take_along_axis(logp, labels[:, None].astype(jnp.int32), axis=1))
    p = jnp.clip(jax.nn.softmax(pred.astype(jnp.float32), axis=1), _EPS, 1.0)
    oh = jnp.clip(jax.nn.one_hot(labels, num_classes, dtype=jnp.float32), 1e-4, 1.0)
    rce = -jnp.sum(p * jnp.log(oh), axis=1)
    return a * ce + b * jnp.mean(rce)


if __name__ == "__main__":
    num_classes = 10
    N = 8
    key = jax.random.PRNGKey(0)
    k1, k2 = jax.random.split(key)
    pred = jax.random.normal(k1, (N, num_classes), dtype=jnp.float32)
    labels = jax.random.randint(k2, (N,), 0, num_classes, dtype=jnp.int32)

    loss = sce_loss(pred, labels, a=1.0, b=1.0)
    loss = jax.block_until_ready(loss)

    ref = _reference(pred, labels, num_classes=num_classes, a=1.0, b=1.0)
    assert jnp.allclose(loss, ref, rtol=1e-5, atol=1e-5), (loss, ref)
    print("KERNEL_OK")
</pallas_src>

<mosaic_0001>
module attributes {stable_mosaic.version = 11 : i64} {
  func.func @_sce_kernel(%arg0: i32, %arg1: memref<8x10xf32, #tpu.memory_space<vmem>>, %arg2: memref<8x1xi32, #tpu.memory_space<vmem>>, %arg3: memref<1x1xf32, #tpu.memory_space<vmem>>) attributes {dimension_semantics = [#tpu.dimension_semantics<parallel>], iteration_bounds = array<i64: 1>, scalar_prefetch = 0 : i64, scratch_operands = 0 : i64, tpu.core_type = #tpu.core_type<tc>, window_params = [{transform_indices = @transform_0, window_bounds = array<i64: 8, 10>}, {transform_indices = @transform_1, window_bounds = array<i64: 8, 1>}, {transform_indices = @transform_2, window_bounds = array<i64: 1, 1>}]} {
    %c0 = arith.constant 0 : index
    %c0_0 = arith.constant 0 : index
    %0 = vector.load %arg1[%c0, %c0_0] : memref<8x10xf32, #tpu.memory_space<vmem>>, vector<8x10xf32>
    %c0_1 = arith.constant 0 : index
    %c0_2 = arith.constant 0 : index
    %1 = vector.load %arg2[%c0_1, %c0_2] : memref<8x1xi32, #tpu.memory_space<vmem>>, vector<8x1xi32>
    %2 = tpu.iota {dimensions = array<i32: 1>} : vector<8x10xi32>
    %3 = vector.broadcast %1 : vector<8x1xi32> to vector<8x10xi32>
    %4 = arith.cmpi eq, %2, %3 : vector<8x10xi32>
    %cst = arith.constant 0.000000e+00 : f32
    %5 = vector.broadcast %cst : f32 to vector<8x10xf32>
    %6 = arith.select %4, %0, %5 : vector<8x10xi1>, vector<8x10xf32>
    %cst_3 = arith.constant dense<0.000000e+00> : vector<8xf32>
    %7 = vector.multi_reduction <add>, %6, %cst_3 [1] : vector<8x10xf32> to vector<8xf32>
    %8 = vector.shape_cast %7 : vector<8xf32> to vector<8x1xf32>
    %cst_4 = arith.constant dense<0xFF800000> : vector<8xf32>
    %9 = vector.multi_reduction <maximumf>, %0, %cst_4 [1] : vector<8x10xf32> to vector<8xf32>
    %10 = vector.shape_cast %9 : vector<8xf32> to vector<8x1xf32>
    %11 = vector.broadcast %10 : vector<8x1xf32> to vector<8x10xf32>
    %12 = arith.subf %0, %11 : vector<8x10xf32>
    %13 = math.exp %12 : vector<8x10xf32>
    %cst_5 = arith.constant dense<0.000000e+00> : vector<8xf32>
    %14 = vector.multi_reduction <add>, %13, %cst_5 [1] : vector<8x10xf32> to vector<8xf32>
    %15 = vector.shape_cast %14 : vector<8xf32> to vector<8x1xf32>
    %16 = math.log %15 : vector<8x1xf32>
    %17 = arith.addf %10, %16 : vector<8x1xf32>
    %18 = arith.subf %17, %8 : vector<8x1xf32>
    %cst_6 = arith.constant 9.99999993E-9 : f32
    %19 = vector.broadcast %cst_6 : f32 to vector<8x1xf32>
    %20 = arith.mulf %19, %15 : vector<8x1xf32>
    %21 = vector.broadcast %20 : vector<8x1xf32> to vector<8x10xf32>
    %22 = arith.maximumf %13, %21 : vector<8x10xf32>
    %cst_7 = arith.constant dense<0.000000e+00> : vector<8xf32>
    %23 = vector.multi_reduction <add>, %22, %cst_7 [1] : vector<8x10xf32> to vector<8xf32>
    %24 = vector.shape_cast %23 : vector<8xf32> to vector<8x1xf32>
    %25 = arith.divf %24, %15 : vector<8x1xf32>
    %cst_8 = arith.constant 0.000000e+00 : f32
    %26 = vector.broadcast %cst_8 : f32 to vector<8x1xf32>
    %27 = arith.subf %26, %18 : vector<8x1xf32>
    %28 = math.exp %27 : vector<8x1xf32>
    %cst_9 = arith.constant 9.99999993E-9 : f32
    %29 = vector.broadcast %cst_9 : f32 to vector<8x1xf32>
    %30 = arith.maximumf %28, %29 : vector<8x1xf32>
    %31 = arith.subf %25, %30 : vector<8x1xf32>
    %cst_10 = arith.constant 9.21034049 : f32
    %32 = vector.broadcast %cst_10 : f32 to vector<8x1xf32>
    %33 = arith.mulf %32, %31 : vector<8x1xf32>
    %cst_11 = arith.constant 1.000000e+00 : f32
    %34 = vector.broadcast %cst_11 : f32 to vector<8x1xf32>
    %35 = arith.mulf %34, %18 : vector<8x1xf32>
    %cst_12 = arith.constant 1.000000e+00 : f32
    %36 = vector.broadcast %cst_12 : f32 to vector<8x1xf32>
    %37 = arith.mulf %36, %33 : vector<8x1xf32>
    %38 = arith.addf %35, %37 : vector<8x1xf32>
    %cst_13 = arith.constant dense<0.000000e+00> : vector<1xf32>
    %39 = vector.multi_reduction <add>, %38, %cst_13 [0] : vector<8x1xf32> to vector<1xf32>
    %40 = vector.shape_cast %39 : vector<1xf32> to vector<1x1xf32>
    %c0_14 = arith.constant 0 : index
    %c0_15 = arith.constant 0 : index
    %41 = vector.load %arg3[%c0_14, %c0_15] : memref<1x1xf32, #tpu.memory_space<vmem>>, vector<1x1xf32>
    tpu.vector_store %arg3[%c0_14, %c0_15], %40 {strides = array<i32>} : memref<1x1xf32, #tpu.memory_space<vmem>>, vector<1x1xf32>,
    return
  }
  func.func @transform_0(%arg0: i32) -> (i32, i32) {
    %c0_i32 = arith.constant 0 : i32
    %c0_i32_0 = arith.constant 0 : i32
    return %arg0, %c0_i32 : i32, i32
  }
  func.func @transform_1(%arg0: i32) -> (i32, i32) {
    %c0_i32 = arith.constant 0 : i32
    %c0_i32_0 = arith.constant 0 : i32
    return %arg0, %c0_i32 : i32, i32
  }
  func.func @transform_2(%arg0: i32) -> (i32, i32) {
    %c0_i32 = arith.constant 0 : i32
    %c0_i32_0 = arith.constant 0 : i32
    return %arg0, %c0_i32 : i32, i32
  }
}

</mosaic_0001>

<llo_original>
// kernel: tpu_custom_call.1
$region0: #{tpu_custom_call.1}
  #allocation0 [shape = 'u32[]', space=smem, size = 0x4, offset = 0x4, fixed_abs, tag = 'smem constant byte address 0x4 - core index']
  #allocation1 [shape = 'u32[144,128]{1,0:T(1,128)}', space=vmem, size = 0x12000, scoped, tag = 'internal scratch']
  %s0 = inlined_call_operand.vmem [shape: f32[8,10], index: 0, kind: input, shape index: {}]
  %s1 = inlined_call_operand.vmem [shape: s32[8,1], index: 1, kind: input, shape index: {}]
  %s2 = inlined_call_operand.hbm [shape: f32[1,1], index: 2, kind: output, shape index: {}]
  %s3 = sld [smem:[#allocation0]]
  $region18: #{tpu_custom_call.1} parent=0
    _
  %s5 = ssub.s32 1, %s3
  %s6 = scalar_select 0, %s5, %s3
  $region1: #{tpu_custom_call.1} parent=0
    #allocation2 [shape = 'u8[512]{0}', space=vmem, size = 0x400, scoped, tag = 'output window, operand 0, single buffered']
    #allocation3 [shape = 's32[1]{0}', space=sflag, size = 0x4, scoped, tag = 'scoped memory for tpu_custom_call.1']
    %7 = vsyncpa [#allocation3], 0
    // Predicated region
    $region2: #{tpu_custom_call.1} parent=1 // pred_check
      _
    $region3: #{tpu_custom_call.1} parent=1 // pred_check_branch
      %9 = sbr.rel (0) target = $region5
    $region4: #{tpu_custom_call.1} parent=1 // pred_region
      _
    $region5: #{tpu_custom_call.1} parent=1 // pred_fallthru
      _
    // Predicated region
    $region6: #{tpu_custom_call.1} parent=1 // pred_check
      _
    $region7: #{tpu_custom_call.1} parent=1 // pred_check_branch
      %11 = sbr.rel (0) target = $region9
    $region8: #{tpu_custom_call.1} parent=1 // pred_region
      _
    $region9: #{tpu_custom_call.1} parent=1 // pred_fallthru
      _
    %v12 = vld [vmem:[%s0] sm:$0xff]
    %v13 = vld [vmem:[%s1] sm:$0xff]
    %v14 = vlaneseq
    %v15 = vand.u32 %v14, 127
    %16 = vset.pattern.permute.xlu0 0
    %17 = vperm.xlu0 %16, %v13
    %v18 = vpop.permute.xlu0 %17
    %vm19 = vcmp.eq.s32.totalorder %v15, %v18
    %v20 = vsel %vm19, %v12, 0.0
    %vm21 = vcmask 80896
    %v22 = vsel %vm21, %v20, 0.0
    %23 = vadd.xlane.f32.xlu0 %v22
    %v24 = vpop.xlane.xlu0 %23
    %v25 = vsel %vm21, %v12, -inf
    %26 = vmax.xlane.f32.xlu0 %v25
    %v27 = vpop.xlane.xlu0 %26
    %v28 = vsub.f32 %v12, %v27
    %v29 = vmul.f32 %v28, 1.442695
    %v30 = vpow.pop %v29
    %v31 = vsel %vm21, %v30, 0.0
    %32 = vadd.xlane.f32.xlu0 %v31
    %v33 = vpop.xlane.xlu0 %32
    %v34 = vlog2.pop %v33
    %v35 = vmul.f32 %v34, 0.6931472
    %v36 = vadd.f32 %v27, %v35
    %v37 = vsub.f32 %v36, %v24
    %v38 = vmul.f32 %v33, 1e-08
    %v39 = vmax.f32 %v30, %v38
    %v40 = vsel %vm21, %v39, 0.0
    %41 = vadd.xlane.f32.xlu0 %v40
    %v42 = vpop.xlane.xlu0 %41
    %v43 = vrcp.pop %v33
    %v44 = vmul.f32 %v42, %v43
    %v45 = vsub.f32 0.0, %v37
    %v46 = vmul.f32 %v45, 1.442695
    %v47 = vpow.pop %v46
    %v48 = vmax.f32 %v47, 1e-08
    %v49 = vsub.f32 %v44, %v48
    %v50 = vmul.f32 %v49, 9.2103405
    %v51 = vadd.f32 %v37, %v50
    %v52 = vrot.slane %v51, 4
    %v53 = vadd.f32 %v51, %v52
    %v54 = vrot.slane %v53, 2
    %v55 = vadd.f32 %v53, %v54
    %v56 = vrot.slane %v55, 1
    %v57 = vadd.f32 %v55, %v56
    %vm58 = vcmask 0
    %59 = vst.msk [vmem:[#allocation2] sm:$0x1] %vm58, %v57
    // Predicated region
    $region10: #{tpu_custom_call.1} parent=1 // pred_check
      _
    $region11: #{tpu_custom_call.1} parent=1 // pred_check_branch
      %61 = sbr.rel (0) target = $region13
    $region12: #{tpu_custom_call.1} parent=1 // pred_region
      %s63 = ssub.s32 16, 16
      %64 = vsyncadd [#allocation3], %s63
      %s66 = sshll.u32 [#allocation2], 4
      %s67 = int_to_ptr.vmem [resolvable:$true] %s66
      %69 = dma.vmem_to_hbm [thread:$0]  %s67, 16, %s2, [#allocation3]
    $region13: #{tpu_custom_call.1} parent=1 // pred_fallthru
      _
    // Predicated region
    $region14: #{tpu_custom_call.1} parent=1 // pred_check
      _
    $region15: #{tpu_custom_call.1} parent=1 // pred_check_branch
      %71 = sbr.rel (0) target = $region17
    $region16: #{tpu_custom_call.1} parent=1 // pred_region
      %72 = dma.done [#allocation3], 16
    $region17: #{tpu_custom_call.1} parent=1 // pred_fallthru
      _
    %73 = vsyncpa [#allocation3], 1

</llo_original>
